<compile_context>
chip_gen: v5e
topology: v5e:2x2
jax: 0.10.0
libtpu: 0.0.40
codegen_flags: <defaults>
</compile_context>

<pallas_src>
import functools

import numpy as np
import jax
import jax.numpy as jnp
from jax.experimental import pallas as pl
from jax.experimental.pallas import tpu as pltpu


_SUBLANES = 8                          # f32 sublane granule
_TARGET_TILE_BYTES = 2 * 1024 * 1024   # ~2 MiB per buffer per array
_PALLAS_MIN_ELEMENTS = 1 << 18         # 256K: below this XLA fusion already hits roofline
_VMEM_LIMIT_BYTES = 32 * 1024 * 1024


def _round_up(x, m):
    return ((x + m - 1) // m) * m


def _combine_kernel(c_ref, l0_ref, l1_ref, out_ref, *, use_bias):
    """out = c0 * l0 + c1 * l1 (+ bias); compute in f32, store in out dtype.

    c_ref  : SMEM (3,) f32          -- [c0, c1, bias] precomputed scalars
    l*_ref : VMEM (tile_rows, C)    -- head-loss tiles in native dtype
    out_ref: VMEM (tile_rows, C)    -- combined-loss tile
    """
    acc = (c_ref[0] * l0_ref[...].astype(jnp.float32)
           + c_ref[1] * l1_ref[...].astype(jnp.float32))
    if use_bias:
        acc = acc + c_ref[2]
    out_ref[...] = acc.astype(out_ref.dtype)


def _choose_tile_rows(rows, row_bytes):
    """Pick tile_rows: ~2 MiB buffers, multiple of 8, and >=2 grid steps when possible."""
    by_bytes = max(_SUBLANES, (_TARGET_TILE_BYTES // max(row_bytes, 1)) // _SUBLANES * _SUBLANES)
    tile_rows = min(by_bytes, _round_up(rows, _SUBLANES))
    if tile_rows >= rows:
        if rows >= 2 * _SUBLANES:
            # Split into >=2 blocks so v7x's two TensorCores both get work.
            tile_rows = _round_up(pl.cdiv(rows, 2), _SUBLANES)
        else:
            # Tiny row count: single block, block dim == array dim (always legal).
            tile_rows = rows
    return tile_rows


def _combine_pallas(l0_2d, l1_2d, coeffs, use_bias, out_dtype):
    """Tiled, double-buffered, elementwise combine over the original 2-D view."""
    rows, cols = l0_2d.shape
    elem_bytes = max(l0_2d.dtype.itemsize, l1_2d.dtype.itemsize,
                     jnp.dtype(out_dtype).itemsize)
    tile_rows = _choose_tile_rows(rows, cols * elem_bytes)
    grid = (pl.cdiv(rows, tile_rows),)

    kernel = functools.partial(_combine_kernel, use_bias=use_bias)

    return pl.pallas_call(
        kernel,
        out_shape=jax.ShapeDtypeStruct((rows, cols), out_dtype),
        grid_spec=pltpu.PrefetchScalarGridSpec(
            num_scalar_prefetch=1,   # coeffs land in SMEM before the grid runs
            grid=grid,
            in_specs=[
                pl.BlockSpec((tile_rows, cols), lambda i, c: (i, 0)),
                pl.BlockSpec((tile_rows, cols), lambda i, c: (i, 0)),
            ],
            out_specs=pl.BlockSpec((tile_rows, cols), lambda i, c: (i, 0)),
        ),
        compiler_params=pltpu.CompilerParams(
            dimension_semantics=("parallel",),      # v7x megacore splits the row blocks
            vmem_limit_bytes=_VMEM_LIMIT_BYTES,
        ),
    )(coeffs, l0_2d, l1_2d)


def multi_head_loss(losses, weights, mode, *, force_pallas=False):
    """JAX/Pallas equivalent of MultiHeadLoss.forward.

    losses : list of 2 arrays (typically scalars).
    weights: array-like of shape (2,) (the nn.Parameter / fixed tensor).
    mode   : 'learnable' or 'fixed' (static).
    Returns (combined_loss, losses), mirroring the PyTorch module.
    """
    assert len(losses) == 2, "MultiHeadLoss is parameterized for 2 heads"
    if mode not in ("learnable", "fixed"):
        raise ValueError(f"unsupported mode: {mode}")

    l0 = jnp.asarray(losses[0])
    l1 = jnp.asarray(losses[1])
    w = jnp.asarray(weights, dtype=jnp.float32).reshape((2,))

    # Hoisted scalar work (done once, not per vreg / per element).
    if mode == "learnable":
        c0, c1, bias, use_bias = jnp.exp(-w[0]), jnp.exp(-w[1]), w[0] + w[1], True
    else:  # 'fixed'
        c0, c1, bias, use_bias = w[0], w[1], jnp.float32(0.0), False

    # Match torch type promotion (loss dtype x f32 weights).
    out_dtype = jnp.result_type(l0.dtype, l1.dtype, jnp.float32)

    same_shape = l0.shape == l1.shape
    n = int(l0.size)
    use_pallas = (same_shape and l0.ndim >= 2
                  and (force_pallas or n >= _PALLAS_MIN_ELEMENTS))

    if not use_pallas:
        # Scalar / small / broadcasting case: XLA fuses these few FLOPs for free.
        combined = c0 * l0.astype(out_dtype) + c1 * l1.astype(out_dtype)
        if use_bias:
            combined = combined + bias
        combined = combined.astype(out_dtype)
    else:
        shape = l0.shape
        cols = shape[-1]
        rows = n // cols
        # Leading-dims collapse is a free row-major reshape; native dtype preserved.
        l0_2d = l0.reshape(rows, cols)
        l1_2d = l1.reshape(rows, cols)
        coeffs = jnp.stack([c0, c1, bias]).astype(jnp.float32)  # (3,) -> SMEM
        out_2d = _combine_pallas(l0_2d, l1_2d, coeffs, use_bias, out_dtype)
        combined = out_2d.reshape(shape)

    return combined, list(losses)


if __name__ == "__main__":
    key = jax.random.PRNGKey(0)
    k0, k1, k2, k3, k4, k5 = jax.random.split(key, 6)

    # ------------------------------------------------------------------
    # Case 1: typical usage -- the two head losses are scalar tensors
    # (fast jnp path; identical semantics to the torch module).
    # ------------------------------------------------------------------
    loss0 = jnp.abs(jax.random.normal(k0, ())).astype(jnp.float32)
    loss1 = jnp.abs(jax.random.normal(k1, ())).astype(jnp.float32)

    # learnable mode, weights initialized to [0., 0.] (as in __init__)
    learnable_w = jnp.zeros((2,), dtype=jnp.float32)
    comb_l, losses_l = multi_head_loss([loss0, loss1], learnable_w, mode="learnable")
    comb_l = jax.block_until_ready(comb_l)
    ref_l = (np.exp(-0.0) * float(loss0) + 0.0) + (np.exp(-0.0) * float(loss1) + 0.0)
    assert np.allclose(np.asarray(comb_l), ref_l, rtol=1e-6, atol=1e-6), (comb_l, ref_l)

    # learnable mode with non-trivial weights
    learnable_w2 = jnp.asarray([0.3, -0.2], dtype=jnp.float32)
    comb_l2, _ = multi_head_loss([loss0, loss1], learnable_w2, mode="learnable")
    comb_l2 = jax.block_until_ready(comb_l2)
    ref_l2 = (np.exp(-0.3) * float(loss0) + 0.3) + (np.exp(0.2) * float(loss1) - 0.2)
    assert np.allclose(np.asarray(comb_l2), ref_l2, rtol=1e-5, atol=1e-5), (comb_l2, ref_l2)

    # fixed mode
    fixed_w = jnp.asarray([0.7, 1.3], dtype=jnp.float32)
    comb_f, losses_f = multi_head_loss([loss0, loss1], fixed_w, mode="fixed")
    comb_f = jax.block_until_ready(comb_f)
    ref_f = 0.7 * float(loss0) + 1.3 * float(loss1)
    assert np.allclose(np.asarray(comb_f), ref_f, rtol=1e-6, atol=1e-6), (comb_f, ref_f)

    # Pass-through of losses (second element of returned tuple).
    assert np.allclose(np.asarray(losses_l[0]), np.asarray(loss0))
    assert np.allclose(np.asarray(losses_l[1]), np.asarray(loss1))

    # ------------------------------------------------------------------
    # Case 2: per-element losses through the Pallas kernel (forced so the
    # kernel is exercised at a small shape). Non-128 trailing dim and a
    # ragged last row block exercise direct-shape tiling.
    # ------------------------------------------------------------------
    big_shape = (300, 160)
    big0 = jax.random.normal(k2, big_shape, dtype=jnp.float32)
    big1 = jax.random.normal(k3, big_shape, dtype=jnp.float32)

    comb_big_l, _ = multi_head_loss([big0, big1], learnable_w2, mode="learnable",
                                    force_pallas=True)
    comb_big_l = jax.block_until_ready(comb_big_l)
    ref_big_l = (jnp.exp(jnp.float32(-0.3)) * big0 + 0.3) + (jnp.exp(jnp.float32(0.2)) * big1 - 0.2)
    assert comb_big_l.shape == big_shape
    assert np.allclose(np.asarray(comb_big_l), np.asarray(ref_big_l), rtol=1e-5, atol=1e-5)

    comb_big_f, _ = multi_head_loss([big0, big1], fixed_w, mode="fixed",
                                    force_pallas=True)
    comb_big_f = jax.block_until_ready(comb_big_f)
    ref_big_f = 0.7 * big0 + 1.3 * big1
    assert np.allclose(np.asarray(comb_big_f), np.asarray(ref_big_f), rtol=1e-5, atol=1e-5)

    # ------------------------------------------------------------------
    # Case 3: bf16 losses stay bf16 over HBM; compute in f32; output f32
    # (torch promotion with f32 weights).
    # ------------------------------------------------------------------
    bf_shape = (256, 128)
    bf0 = jax.random.normal(k4, bf_shape, dtype=jnp.float32).astype(jnp.bfloat16)
    bf1 = jax.random.normal(k5, bf_shape, dtype=jnp.float32).astype(jnp.bfloat16)
    comb_bf, _ = multi_head_loss([bf0, bf1], fixed_w, mode="fixed", force_pallas=True)
    comb_bf = jax.block_until_ready(comb_bf)
    assert comb_bf.dtype == jnp.float32
    ref_bf = 0.7 * bf0.astype(jnp.float32) + 1.3 * bf1.astype(jnp.float32)
    assert np.allclose(np.asarray(comb_bf), np.asarray(ref_bf), rtol=1e-5, atol=1e-5)

    print("KERNEL_OK")
</pallas_src>

<mosaic_0001>
module attributes {stable_mosaic.version = 11 : i64} {
  func.func @_combine_kernel(%arg0: i32, %arg1: memref<3xf32, #tpu.memory_space<smem>>, %arg2: memref<152x160xf32, #tpu.memory_space<vmem>>, %arg3: memref<152x160xf32, #tpu.memory_space<vmem>>, %arg4: memref<152x160xf32, #tpu.memory_space<vmem>>) attributes {dimension_semantics = [#tpu.dimension_semantics<parallel>], iteration_bounds = array<i64: 2>, scalar_prefetch = 1 : i64, scratch_operands = 0 : i64, tpu.core_type = #tpu.core_type<tc>, window_params = [{transform_indices = @transform_0, window_bounds = array<i64: 152, 160>}, {transform_indices = @transform_1, window_bounds = array<i64: 152, 160>}, {transform_indices = @transform_2, window_bounds = array<i64: 152, 160>}]} {
    %c0 = arith.constant 0 : index
    %0 = memref.load %arg1[%c0] : memref<3xf32, #tpu.memory_space<smem>>
    %c0_0 = arith.constant 0 : index
    %c0_1 = arith.constant 0 : index
    %1 = vector.load %arg2[%c0_0, %c0_1] : memref<152x160xf32, #tpu.memory_space<vmem>>, vector<152x160xf32>
    %2 = vector.broadcast %0 : f32 to vector<152x160xf32>
    %3 = arith.mulf %2, %1 : vector<152x160xf32>
    %c1 = arith.constant 1 : index
    %4 = memref.load %arg1[%c1] : memref<3xf32, #tpu.memory_space<smem>>
    %c0_2 = arith.constant 0 : index
    %c0_3 = arith.constant 0 : index
    %5 = vector.load %arg3[%c0_2, %c0_3] : memref<152x160xf32, #tpu.memory_space<vmem>>, vector<152x160xf32>
    %6 = vector.broadcast %4 : f32 to vector<152x160xf32>
    %7 = arith.mulf %6, %5 : vector<152x160xf32>
    %8 = arith.addf %3, %7 : vector<152x160xf32>
    %c2 = arith.constant 2 : index
    %9 = memref.load %arg1[%c2] : memref<3xf32, #tpu.memory_space<smem>>
    %10 = vector.broadcast %9 : f32 to vector<152x160xf32>
    %11 = arith.addf %8, %10 : vector<152x160xf32>
    %c0_4 = arith.constant 0 : index
    %c0_5 = arith.constant 0 : index
    %12 = vector.load %arg4[%c0_4, %c0_5] : memref<152x160xf32, #tpu.memory_space<vmem>>, vector<152x160xf32>
    tpu.vector_store %arg4[%c0_4, %c0_5], %11 {strides = array<i32>} : memref<152x160xf32, #tpu.memory_space<vmem>>, vector<152x160xf32>,
    return
  }
  func.func @transform_0(%arg0: i32, %arg1: memref<3xf32, #tpu.memory_space<smem>>) -> (i32, i32) {
    %c0_i32 = arith.constant 0 : i32
    %c0_i32_0 = arith.constant 0 : i32
    return %arg0, %c0_i32 : i32, i32
  }
  func.func @transform_1(%arg0: i32, %arg1: memref<3xf32, #tpu.memory_space<smem>>) -> (i32, i32) {
    %c0_i32 = arith.constant 0 : i32
    %c0_i32_0 = arith.constant 0 : i32
    return %arg0, %c0_i32 : i32, i32
  }
  func.func @transform_2(%arg0: i32, %arg1: memref<3xf32, #tpu.memory_space<smem>>) -> (i32, i32) {
    %c0_i32 = arith.constant 0 : i32
    %c0_i32_0 = arith.constant 0 : i32
    return %arg0, %c0_i32 : i32, i32
  }
}

</mosaic_0001>

<llo_original>
// kernel: tpu_custom_call.1
$region0: #{tpu_custom_call.1}
  #allocation0 [shape = 'u32[]', space=smem, size = 0x4, offset = 0x4, fixed_abs, tag = 'smem constant byte address 0x4 - core index']
  #allocation1 [shape = 'u32[72,128]{1,0:T(1,128)}', space=vmem, size = 0x9000, scoped, tag = 'internal scratch']
  #allocation2 [shape = 's32[1]{0}', space=sflag, size = 0x4, scoped, tag = 'scoped memory for tpu_custom_call.1']
  #allocation3 [shape = 'u8[512]{0}', space=smem, size = 0x200, scoped, tag = 'prefetched SMEM operand 0']
  %s0 = inlined_call_operand.vmem [shape: f32[3], index: 0, kind: input, shape index: {}]
  %s1 = inlined_call_operand.vmem [shape: f32[300,160], index: 1, kind: input, shape index: {}]
  %s2 = inlined_call_operand.vmem [shape: f32[300,160], index: 2, kind: input, shape index: {}]
  %s3 = inlined_call_operand.vmem [shape: f32[300,160], index: 3, kind: output, shape index: {}]
  %s4 = sld [smem:[#allocation0]]
  $region41: #{tpu_custom_call.1} parent=0
    _
  %s6 = ssub.s32 1, %s4
  %s7 = scalar_select 0, %s6, %s4
  %s9 = sshll.u32 %s0, 4
  %s10 = int_to_ptr.vmem [resolvable:$true] %s9
  %12 = dma.vmem_to_smem %s10, 16, [#allocation3], [#allocation2]
  %14 = dma.done [#allocation2], 16
  %15 = sfence
  loop: start=0, step=1, limit=4
  $region2: #{tpu_custom_call.1} parent=0 // loop_pre_header
    _
  $region3: #{tpu_custom_call.1} parent=0 // loop_header
    %s17 = sphi 0, %s21
    %p18 = scmp.ge.s32.totalorder %s17, 4
    %s27 = sphi 0, %s29
    %s30 = sphi 0, %s27
    %s31 = sphi 0, %s30
    %s47 = sphi 0, %s31
    %s53 = sphi 0, %s55
    %s56 = sphi 0, %s53
    %s57 = sphi 0, %s56
    %s73 = sphi 0, %s57
    %s79 = sphi 0, %s81
    %s82 = sphi 0, %s79
    %s83 = sphi 0, %s82
    %s99 = sphi 0, %s83
  $region4: #{tpu_custom_call.1} parent=0 // loop_header_branch
    %20 = sbr.rel (%p18) target = $region8
  $region5: #{tpu_custom_call.1} parent=0 // loop_body
    %s22 = ssub.s32 %s17, 1
    %s23 = ssub.s32 %s17, 2
    %s24 = sadd.s32 %s17, 1
    %s25 = ssub.s32 %s17, %s24
    %p26 = scmp.eq.s32.totalorder %s25, 0
    %s28 = sadd.s32 %s27, 1
    %s29 = scalar_select %p26, %s27, %s28
    %p32 = pneg %p26
    %p33 = scmp.eq.s32.totalorder %s17, 1
    %p34 = por %p32, %p33
    %p35 = scmp.ne.s32.totalorder %s27, %s30
    %p36 = scmp.eq.s32.totalorder %s17, 0
    %p37 = por %p35, %p36
    %p38 = scmp.ne.s32.totalorder %s27, %s30
    %p39 = scmp.eq.s32.totalorder %s22, 1
    %p40 = por %p38, %p39
    %p41 = scmp.ne.s32.totalorder %s30, %s31
    %p42 = scmp.eq.s32.totalorder %s22, 0
    %p43 = por %p41, %p42
    %p44 = scmp.ne.s32.totalorder %s30, %s31
    %p45 = scmp.eq.s32.totalorder %s23, 1
    %p46 = por %p44, %p45
    %p48 = scmp.ne.s32.totalorder %s31, %s47
    %p49 = scmp.eq.s32.totalorder %s23, 0
    %p50 = por %p48, %p49
    %s51 = ssub.s32 %s17, %s24
    %p52 = scmp.eq.s32.totalorder %s51, 0
    %s54 = sadd.s32 %s53, 1
    %s55 = scalar_select %p52, %s53, %s54
    %p58 = pneg %p52
    %p59 = scmp.eq.s32.totalorder %s17, 1
    %p60 = por %p58, %p59
    %p61 = scmp.ne.s32.totalorder %s53, %s56
    %p62 = scmp.eq.s32.totalorder %s17, 0
    %p63 = por %p61, %p62
    %p64 = scmp.ne.s32.totalorder %s53, %s56
    %p65 = scmp.eq.s32.totalorder %s22, 1
    %p66 = por %p64, %p65
    %p67 = scmp.ne.s32.totalorder %s56, %s57
    %p68 = scmp.eq.s32.totalorder %s22, 0
    %p69 = por %p67, %p68
    %p70 = scmp.ne.s32.totalorder %s56, %s57
    %p71 = scmp.eq.s32.totalorder %s23, 1
    %p72 = por %p70, %p71
    %p74 = scmp.ne.s32.totalorder %s57, %s73
    %p75 = scmp.eq.s32.totalorder %s23, 0
    %p76 = por %p74, %p75
    %s77 = ssub.s32 %s17, %s24
    %p78 = scmp.eq.s32.totalorder %s77, 0
    %s80 = sadd.s32 %s79, 1
    %s81 = scalar_select %p78, %s79, %s80
    %p84 = pneg %p78
    %p85 = scmp.eq.s32.totalorder %s17, 1
    %p86 = por %p84, %p85
    %p87 = scmp.ne.s32.totalorder %s79, %s82
    %p88 = scmp.eq.s32.totalorder %s17, 0
    %p89 = por %p87, %p88
    %p90 = scmp.ne.s32.totalorder %s79, %s82
    %p91 = scmp.eq.s32.totalorder %s22, 1
    %p92 = por %p90, %p91
    %p93 = scmp.ne.s32.totalorder %s82, %s83
    %p94 = scmp.eq.s32.totalorder %s22, 0
    %p95 = por %p93, %p94
    %p96 = scmp.ne.s32.totalorder %s82, %s83
    %p97 = scmp.eq.s32.totalorder %s23, 1
    %p98 = por %p96, %p97
    %p100 = scmp.ne.s32.totalorder %s83, %s99
    %p101 = scmp.eq.s32.totalorder %s23, 0
    %p102 = por %p100, %p101
    %p103 = scmp.le.s32.totalorder 1, %s17
    %p104 = scmp.lt.s32.totalorder %s17, 3
    %p105 = pnand %p103, %p104
    %p106 = pneg %p105
    // Predicated region
    $region9: #{tpu_custom_call.1} parent=5 // pred_check
      _
    $region10: #{tpu_custom_call.1} parent=5 // pred_check_branch
      %108 = sbr.rel (%p105) target = $region12
    $region11: #{tpu_custom_call.1} parent=5 // pred_region
      %s109 = ssub.s32 %s17, 1
    $region12: #{tpu_custom_call.1} parent=5 // pred_fallthru
      _
    %p110 = scmp.lt.s32.totalorder %s17, 2
    // Predicated region
    $region13: #{tpu_custom_call.1} parent=5 // pred_check
      %p111 = pneg %p110
    $region14: #{tpu_custom_call.1} parent=5 // pred_check_branch
      %113 = sbr.rel (%p111) target = $region16
    $region15: #{tpu_custom_call.1} parent=5 // pred_region
      // Predicated region
      $region17: #{tpu_custom_call.1} parent=15 // pred_check
        %p114 = pneg %p37
      $region18: #{tpu_custom_call.1} parent=15 // pred_check_branch
        %116 = sbr.rel (%p114) target = $region20
      $region19: #{tpu_custom_call.1} parent=15 // pred_region
        %s117 = smul.u32 19, %s17
        %p118 = scmp.lt.s32.totalorder %s117, 37
        %s119 = scalar_select %p118, %s117, 37
        %s120 = smul.addr %s119, 2
        %s121 = smul.addr %s120, 8
        %s122 = scalar_lea.vmem %s1, %s121
        %s123 = smul.u32 19, %s17
      $region20: #{tpu_custom_call.1} parent=15 // pred_fallthru
        _
      // Predicated region
      $region21: #{tpu_custom_call.1} parent=15 // pred_check
        %p124 = pneg %p63
      $region22: #{tpu_custom_call.1} parent=15 // pred_check_branch
        %126 = sbr.rel (%p124) target = $region24
      $region23: #{tpu_custom_call.1} parent=15 // pred_region
        %s127 = smul.u32 19, %s17
        %p128 = scmp.lt.s32.totalorder %s127, 37
        %s129 = scalar_select %p128, %s127, 37
        %s130 = smul.addr %s129, 2
        %s131 = smul.addr %s130, 8
        %s132 = scalar_lea.vmem %s2, %s131
        %s133 = smul.u32 19, %s17
      $region24: #{tpu_custom_call.1} parent=15 // pred_fallthru
        _
    $region16: #{tpu_custom_call.1} parent=5 // pred_fallthru
      _
    %p134 = scmp.le.s32.totalorder 1, %s17
    %p135 = scmp.lt.s32.totalorder %s17, 3
    %p136 = pnand %p134, %p135
    %p137 = pneg %p136
    // Predicated region
    $region25: #{tpu_custom_call.1} parent=5 // pred_check
      _
    $region26: #{tpu_custom_call.1} parent=5 // pred_check_branch
      %139 = sbr.rel (%p136) target = $region28
    $region27: #{tpu_custom_call.1} parent=5 // pred_region
      %s140 = ssub.s32 %s17, 1
      %s141 = smul.u32 19, %s22
      %p142 = scmp.lt.s32.totalorder %s141, 37
      %s143 = scalar_select %p142, %s141, 37
      %s144 = smul.addr %s143, 2
      %s145 = smul.addr %s144, 8
      %s146 = scalar_lea.vmem %s1, %s145
      %p147 = pneg %p43
      %p148 = pneg %p40
      %s149 = smul.u32 19, %s22
      %p150 = scmp.lt.s32.totalorder %s149, 37
      %s151 = scalar_select %p150, %s149, 37
      %s152 = smul.addr %s151, 2
      %s153 = smul.addr %s152, 8
      %s154 = scalar_lea.vmem %s2, %s153
      %p155 = pneg %p69
      %p156 = pneg %p66
      %p157 = pneg %p95
      %p158 = pneg %p92
      %s159 = smul.u32 19, %s22
      %p160 = scmp.lt.s32.totalorder %s159, 37
      %s161 = scalar_select %p160, %s159, 37
      %s162 = smul.addr %s161, 2
      %s163 = smul.addr %s162, 8
      %s164 = scalar_lea.vmem %s3, %s163
      %s165 = smul.u32 19, %s22
      %p166 = scmp.lt.s32.totalorder %s165, 37
      %s167 = scalar_select %p166, %s165, 37
      %s168 = smul.addr %s167, 2
      %s169 = smul.addr %s168, 8
      %s170 = scalar_lea.vmem %s1, %s169
      %s171 = smul.u32 19, %s22
      %s172 = smul.u32 19, %s22
      %p173 = scmp.lt.s32.totalorder %s172, 37
      %s174 = scalar_select %p173, %s172, 37
      %s175 = smul.addr %s174, 2
      %s176 = smul.addr %s175, 8
      %s177 = scalar_lea.vmem %s2, %s176
      %s178 = smul.u32 19, %s22
      %s179 = smul.u32 19, %s22
      %p180 = scmp.lt.s32.totalorder %s179, 37
      %s181 = scalar_select %p180, %s179, 37
      %s182 = smul.addr %s181, 2
      %s183 = smul.addr %s182, 8
      %s184 = scalar_lea.vmem %s3, %s183
      %s185 = smul.u32 19, %s22
      %s186 = sld [smem:[#allocation3]]
      %v187 = vld [vmem:[%s170] sm:$0xff]
      %v188 = vld [vmem:[%s170 + $0x8] sm:$0xff]
      %v189 = vld [vmem:[%s170 + $0x10] sm:$0xff]
      %v190 = vld [vmem:[%s170 + $0x18] sm:$0xff]
      %v191 = vld [vmem:[%s170 + $0x20] sm:$0xff]
      %v192 = vld [vmem:[%s170 + $0x28] sm:$0xff]
      %v193 = vld [vmem:[%s170 + $0x30] sm:$0xff]
      %v194 = vld [vmem:[%s170 + $0x38] sm:$0xff]
      %v195 = vld [vmem:[%s170 + $0x40] sm:$0xff]
      %v196 = vld [vmem:[%s170 + $0x48] sm:$0xff]
      %v197 = vld [vmem:[%s170 + $0x50] sm:$0xff]
      %v198 = vld [vmem:[%s170 + $0x58] sm:$0xff]
      %v199 = vld [vmem:[%s170 + $0x60] sm:$0xff]
      %v200 = vld [vmem:[%s170 + $0x68] sm:$0xff]
      %v201 = vld [vmem:[%s170 + $0x70] sm:$0xff]
      %v202 = vld [vmem:[%s170 + $0x78] sm:$0xff]
      %v203 = vld [vmem:[%s170 + $0x80] sm:$0xff]
      %v204 = vld [vmem:[%s170 + $0x88] sm:$0xff]
      %v205 = vld [vmem:[%s170 + $0x90] sm:$0xff]
      %v206 = vld [vmem:[%s170 + $0x98] sm:$0xff]
      %v207 = vld [vmem:[%s170 + $0xa0] sm:$0xff]
      %v208 = vld [vmem:[%s170 + $0xa8] sm:$0xff]
      %v209 = vld [vmem:[%s170 + $0xb0] sm:$0xff]
      %v210 = vld [vmem:[%s170 + $0xb8] sm:$0xff]
      %v211 = vld [vmem:[%s170 + $0xc0] sm:$0xff]
      %v212 = vld [vmem:[%s170 + $0xc8] sm:$0xff]
      %v213 = vld [vmem:[%s170 + $0xd0] sm:$0xff]
      %v214 = vld [vmem:[%s170 + $0xd8] sm:$0xff]
      %v215 = vld [vmem:[%s170 + $0xe0] sm:$0xff]
      %v216 = vld [vmem:[%s170 + $0xe8] sm:$0xff]
      %v217 = vld [vmem:[%s170 + $0xf0] sm:$0xff]
      %v218 = vld [vmem:[%s170 + $0xf8] sm:$0xff]
      %v219 = vld [vmem:[%s170 + $0x100] sm:$0xff]
      %v220 = vld [vmem:[%s170 + $0x108] sm:$0xff]
      %v221 = vld [vmem:[%s170 + $0x110] sm:$0xff]
      %v222 = vld [vmem:[%s170 + $0x118] sm:$0xff]
      %v223 = vld [vmem:[%s170 + $0x120] sm:$0xff]
      %v224 = vld [vmem:[%s170 + $0x128] sm:$0xff]
      %v225 = vstv %s186
      %v226 = vmul.f32 %v225, %v187
      %v227 = vmul.f32 %v225, %v188
      %v228 = vmul.f32 %v225, %v189
      %v229 = vmul.f32 %v225, %v190
      %v230 = vmul.f32 %v225, %v191
      %v231 = vmul.f32 %v225, %v192
      %v232 = vmul.f32 %v225, %v193
      %v233 = vmul.f32 %v225, %v194
      %v234 = vmul.f32 %v225, %v195
      %v235 = vmul.f32 %v225, %v196
      %v236 = vmul.f32 %v225, %v197
      %v237 = vmul.f32 %v225, %v198
      %v238 = vmul.f32 %v225, %v199
      %v239 = vmul.f32 %v225, %v200
      %v240 = vmul.f32 %v225, %v201
      %v241 = vmul.f32 %v225, %v202
      %v242 = vmul.f32 %v225, %v203
      %v243 = vmul.f32 %v225, %v204
      %v244 = vmul.f32 %v225, %v205
      %v245 = vmul.f32 %v225, %v206
      %v246 = vmul.f32 %v225, %v207
      %v247 = vmul.f32 %v225, %v208
      %v248 = vmul.f32 %v225, %v209
      %v249 = vmul.f32 %v225, %v210
      %v250 = vmul.f32 %v225, %v211
      %v251 = vmul.f32 %v225, %v212
      %v252 = vmul.f32 %v225, %v213
      %v253 = vmul.f32 %v225, %v214
      %v254 = vmul.f32 %v225, %v215
      %v255 = vmul.f32 %v225, %v216
      %v256 = vmul.f32 %v225, %v217
      %v257 = vmul.f32 %v225, %v218
      %v258 = vmul.f32 %v225, %v219
      %v259 = vmul.f32 %v225, %v220
      %v260 = vmul.f32 %v225, %v221
      %v261 = vmul.f32 %v225, %v222
      %v262 = vmul.f32 %v225, %v223
      %v263 = vmul.f32 %v225, %v224
      %s264 = sld [smem:[#allocation3 + $0x1]]
      %v265 = vld [vmem:[%s177] sm:$0xff]
      %v266 = vld [vmem:[%s177 + $0x8] sm:$0xff]
      %v267 = vld [vmem:[%s177 + $0x10] sm:$0xff]
      %v268 = vld [vmem:[%s177 + $0x18] sm:$0xff]
      %v269 = vld [vmem:[%s177 + $0x20] sm:$0xff]
      %v270 = vld [vmem:[%s177 + $0x28] sm:$0xff]
      %v271 = vld [vmem:[%s177 + $0x30] sm:$0xff]
      %v272 = vld [vmem:[%s177 + $0x38] sm:$0xff]
      %v273 = vld [vmem:[%s177 + $0x40] sm:$0xff]
      %v274 = vld [vmem:[%s177 + $0x48] sm:$0xff]
      %v275 = vld [vmem:[%s177 + $0x50] sm:$0xff]
      %v276 = vld [vmem:[%s177 + $0x58] sm:$0xff]
      %v277 = vld [vmem:[%s177 + $0x60] sm:$0xff]
      %v278 = vld [vmem:[%s177 + $0x68] sm:$0xff]
      %v279 = vld [vmem:[%s177 + $0x70] sm:$0xff]
      %v280 = vld [vmem:[%s177 + $0x78] sm:$0xff]
      %v281 = vld [vmem:[%s177 + $0x80] sm:$0xff]
      %v282 = vld [vmem:[%s177 + $0x88] sm:$0xff]
      %v283 = vld [vmem:[%s177 + $0x90] sm:$0xff]
      %v284 = vld [vmem:[%s177 + $0x98] sm:$0xff]
      %v285 = vld [vmem:[%s177 + $0xa0] sm:$0xff]
      %v286 = vld [vmem:[%s177 + $0xa8] sm:$0xff]
      %v287 = vld [vmem:[%s177 + $0xb0] sm:$0xff]
      %v288 = vld [vmem:[%s177 + $0xb8] sm:$0xff]
      %v289 = vld [vmem:[%s177 + $0xc0] sm:$0xff]
      %v290 = vld [vmem:[%s177 + $0xc8] sm:$0xff]
      %v291 = vld [vmem:[%s177 + $0xd0] sm:$0xff]
      %v292 = vld [vmem:[%s177 + $0xd8] sm:$0xff]
      %v293 = vld [vmem:[%s177 + $0xe0] sm:$0xff]
      %v294 = vld [vmem:[%s177 + $0xe8] sm:$0xff]
      %v295 = vld [vmem:[%s177 + $0xf0] sm:$0xff]
      %v296 = vld [vmem:[%s177 + $0xf8] sm:$0xff]
      %v297 = vld [vmem:[%s177 + $0x100] sm:$0xff]
      %v298 = vld [vmem:[%s177 + $0x108] sm:$0xff]
      %v299 = vld [vmem:[%s177 + $0x110] sm:$0xff]
      %v300 = vld [vmem:[%s177 + $0x118] sm:$0xff]
      %v301 = vld [vmem:[%s177 + $0x120] sm:$0xff]
      %v302 = vld [vmem:[%s177 + $0x128] sm:$0xff]
      %v303 = vstv %s264
      %v304 = vmul.f32 %v303, %v265
      %v305 = vmul.f32 %v303, %v266
      %v306 = vmul.f32 %v303, %v267
      %v307 = vmul.f32 %v303, %v268
      %v308 = vmul.f32 %v303, %v269
      %v309 = vmul.f32 %v303, %v270
      %v310 = vmul.f32 %v303, %v271
      %v311 = vmul.f32 %v303, %v272
      %v312 = vmul.f32 %v303, %v273
      %v313 = vmul.f32 %v303, %v274
      %v314 = vmul.f32 %v303, %v275
      %v315 = vmul.f32 %v303, %v276
      %v316 = vmul.f32 %v303, %v277
      %v317 = vmul.f32 %v303, %v278
      %v318 = vmul.f32 %v303, %v279
      %v319 = vmul.f32 %v303, %v280
      %v320 = vmul.f32 %v303, %v281
      %v321 = vmul.f32 %v303, %v282
      %v322 = vmul.f32 %v303, %v283
      %v323 = vmul.f32 %v303, %v284
      %v324 = vmul.f32 %v303, %v285
      %v325 = vmul.f32 %v303, %v286
      %v326 = vmul.f32 %v303, %v287
      %v327 = vmul.f32 %v303, %v288
      %v328 = vmul.f32 %v303, %v289
      %v329 = vmul.f32 %v303, %v290
      %v330 = vmul.f32 %v303, %v291
      %v331 = vmul.f32 %v303, %v292
      %v332 = vmul.f32 %v303, %v293
      %v333 = vmul.f32 %v303, %v294
      %v334 = vmul.f32 %v303, %v295
      %v335 = vmul.f32 %v303, %v296
      %v336 = vmul.f32 %v303, %v297
      %v337 = vmul.f32 %v303, %v298
      %v338 = vmul.f32 %v303, %v299
      %v339 = vmul.f32 %v303, %v300
      %v340 = vmul.f32 %v303, %v301
      %v341 = vmul.f32 %v303, %v302
      %v342 = vadd.f32 %v226, %v304
      %v343 = vadd.f32 %v227, %v305
      %v344 = vadd.f32 %v228, %v306
      %v345 = vadd.f32 %v229, %v307
      %v346 = vadd.f32 %v230, %v308
      %v347 = vadd.f32 %v231, %v309
      %v348 = vadd.f32 %v232, %v310
      %v349 = vadd.f32 %v233, %v311
      %v350 = vadd.f32 %v234, %v312
      %v351 = vadd.f32 %v235, %v313
      %v352 = vadd.f32 %v236, %v314
      %v353 = vadd.f32 %v237, %v315
      %v354 = vadd.f32 %v238, %v316
      %v355 = vadd.f32 %v239, %v317
      %v356 = vadd.f32 %v240, %v318
      %v357 = vadd.f32 %v241, %v319
      %v358 = vadd.f32 %v242, %v320
      %v359 = vadd.f32 %v243, %v321
      %v360 = vadd.f32 %v244, %v322
      %v361 = vadd.f32 %v245, %v323
      %v362 = vadd.f32 %v246, %v324
      %v363 = vadd.f32 %v247, %v325
      %v364 = vadd.f32 %v248, %v326
      %v365 = vadd.f32 %v249, %v327
      %v366 = vadd.f32 %v250, %v328
      %v367 = vadd.f32 %v251, %v329
      %v368 = vadd.f32 %v252, %v330
      %v369 = vadd.f32 %v253, %v331
      %v370 = vadd.f32 %v254, %v332
      %v371 = vadd.f32 %v255, %v333
      %v372 = vadd.f32 %v256, %v334
      %v373 = vadd.f32 %v257, %v335
      %v374 = vadd.f32 %v258, %v336
      %v375 = vadd.f32 %v259, %v337
      %v376 = vadd.f32 %v260, %v338
      %v377 = vadd.f32 %v261, %v339
      %v378 = vadd.f32 %v262, %v340
      %v379 = vadd.f32 %v263, %v341
      %s380 = sld [smem:[#allocation3 + $0x2]]
      %v381 = vstv %s380
      %v382 = vadd.f32 %v342, %v381
      %v383 = vadd.f32 %v343, %v381
      %v384 = vadd.f32 %v344, %v381
      %v385 = vadd.f32 %v345, %v381
      %v386 = vadd.f32 %v346, %v381
      %v387 = vadd.f32 %v347, %v381
      %v388 = vadd.f32 %v348, %v381
      %v389 = vadd.f32 %v349, %v381
      %v390 = vadd.f32 %v350, %v381
      %v391 = vadd.f32 %v351, %v381
      %v392 = vadd.f32 %v352, %v381
      %v393 = vadd.f32 %v353, %v381
      %v394 = vadd.f32 %v354, %v381
      %v395 = vadd.f32 %v355, %v381
      %v396 = vadd.f32 %v356, %v381
      %v397 = vadd.f32 %v357, %v381
      %v398 = vadd.f32 %v358, %v381
      %v399 = vadd.f32 %v359, %v381
      %v400 = vadd.f32 %v360, %v381
      %v401 = vadd.f32 %v361, %v381
      %v402 = vadd.f32 %v362, %v381
      %v403 = vadd.f32 %v363, %v381
      %v404 = vadd.f32 %v364, %v381
      %v405 = vadd.f32 %v365, %v381
      %v406 = vadd.f32 %v366, %v381
      %v407 = vadd.f32 %v367, %v381
      %v408 = vadd.f32 %v368, %v381
      %v409 = vadd.f32 %v369, %v381
      %v410 = vadd.f32 %v370, %v381
      %v411 = vadd.f32 %v371, %v381
      %v412 = vadd.f32 %v372, %v381
      %v413 = vadd.f32 %v373, %v381
      %v414 = vadd.f32 %v374, %v381
      %v415 = vadd.f32 %v375, %v381
      %v416 = vadd.f32 %v376, %v381
      %v417 = vadd.f32 %v377, %v381
      %v418 = vadd.f32 %v378, %v381
      %v419 = vadd.f32 %v379, %v381
      %420 = vst [vmem:[%s184] sm:$0xff] %v382
      %vm421 = vcmask 261120
      %422 = vst.msk [vmem:[%s184 + $0x8] sm:$0xff] %vm421, %v383
      %423 = vst [vmem:[%s184 + $0x10] sm:$0xff] %v384
      %424 = vst.msk [vmem:[%s184 + $0x18] sm:$0xff] %vm421, %v385
      %425 = vst [vmem:[%s184 + $0x20] sm:$0xff] %v386
      %426 = vst.msk [vmem:[%s184 + $0x28] sm:$0xff] %vm421, %v387
      %427 = vst [vmem:[%s184 + $0x30] sm:$0xff] %v388
      %428 = vst.msk [vmem:[%s184 + $0x38] sm:$0xff] %vm421, %v389
      %429 = vst [vmem:[%s184 + $0x40] sm:$0xff] %v390
      %430 = vst.msk [vmem:[%s184 + $0x48] sm:$0xff] %vm421, %v391
      %431 = vst [vmem:[%s184 + $0x50] sm:$0xff] %v392
      %432 = vst.msk [vmem:[%s184 + $0x58] sm:$0xff] %vm421, %v393
      %433 = vst [vmem:[%s184 + $0x60] sm:$0xff] %v394
      %434 = vst.msk [vmem:[%s184 + $0x68] sm:$0xff] %vm421, %v395
      %435 = vst [vmem:[%s184 + $0x70] sm:$0xff] %v396
      %436 = vst.msk [vmem:[%s184 + $0x78] sm:$0xff] %vm421, %v397
      %437 = vst [vmem:[%s184 + $0x80] sm:$0xff] %v398
      %438 = vst.msk [vmem:[%s184 + $0x88] sm:$0xff] %vm421, %v399
      %439 = vst [vmem:[%s184 + $0x90] sm:$0xff] %v400
      %440 = vst.msk [vmem:[%s184 + $0x98] sm:$0xff] %vm421, %v401
      %441 = vst [vmem:[%s184 + $0xa0] sm:$0xff] %v402
      %442 = vst.msk [vmem:[%s184 + $0xa8] sm:$0xff] %vm421, %v403
      %443 = vst [vmem:[%s184 + $0xb0] sm:$0xff] %v404
      %444 = vst.msk [vmem:[%s184 + $0xb8] sm:$0xff] %vm421, %v405
      %445 = vst [vmem:[%s184 + $0xc0] sm:$0xff] %v406
      %446 = vst.msk [vmem:[%s184 + $0xc8] sm:$0xff] %vm421, %v407
      %447 = vst [vmem:[%s184 + $0xd0] sm:$0xff] %v408
      %448 = vst.msk [vmem:[%s184 + $0xd8] sm:$0xff] %vm421, %v409
      %449 = vst [vmem:[%s184 + $0xe0] sm:$0xff] %v410
      %450 = vst.msk [vmem:[%s184 + $0xe8] sm:$0xff] %vm421, %v411
      %451 = vst [vmem:[%s184 + $0xf0] sm:$0xff] %v412
      %452 = vst.msk [vmem:[%s184 + $0xf8] sm:$0xff] %vm421, %v413
      %453 = vst [vmem:[%s184 + $0x100] sm:$0xff] %v414
      %454 = vst.msk [vmem:[%s184 + $0x108] sm:$0xff] %vm421, %v415
      %455 = vst [vmem:[%s184 + $0x110] sm:$0xff] %v416
      %456 = vst.msk [vmem:[%s184 + $0x118] sm:$0xff] %vm421, %v417
      %457 = vst [vmem:[%s184 + $0x120] sm:$0xff] %v418
      %458 = vst.msk [vmem:[%s184 + $0x128] sm:$0xff] %vm421, %v419
      %s459 = smul.u32 19, %s22
      %p460 = scmp.lt.s32.totalorder %s459, 37
      %s461 = scalar_select %p460, %s459, 37
      %s462 = smul.addr %s461, 2
      %s463 = smul.addr %s462, 8
      %s464 = scalar_lea.vmem %s3, %s463
      // Predicated region
      $region29: #{tpu_custom_call.1} parent=27 // pred_check
        %p465 = pneg %p92
      $region30: #{tpu_custom_call.1} parent=27 // pred_check_branch
        %467 = sbr.rel (%p465) target = $region32
      $region31: #{tpu_custom_call.1} parent=27 // pred_region
        %s468 = smul.u32 19, %s22
      $region32: #{tpu_custom_call.1} parent=27 // pred_fallthru
        _
    $region28: #{tpu_custom_call.1} parent=5 // pred_fallthru
      _
    %p469 = scmp.le.s32.totalorder 2, %s17
    // Predicated region
    $region33: #{tpu_custom_call.1} parent=5 // pred_check
      %p470 = pneg %p469
    $region34: #{tpu_custom_call.1} parent=5 // pred_check_branch
      %472 = sbr.rel (%p470) target = $region36
    $region35: #{tpu_custom_call.1} parent=5 // pred_region
      %s473 = ssub.s32 %s17, 2
      // Predicated region
      $region37: #{tpu_custom_call.1} parent=35 // pred_check
        %p474 = pneg %p98
      $region38: #{tpu_custom_call.1} parent=35 // pred_check_branch
        %476 = sbr.rel (%p474) target = $region40
      $region39: #{tpu_custom_call.1} parent=35 // pred_region
        %s477 = smul.u32 19, %s23
        %p478 = scmp.lt.s32.totalorder %s477, 37
        %s479 = scalar_select %p478, %s477, 37
        %s480 = smul.addr %s479, 2
        %s481 = smul.addr %s480, 8
        %s482 = scalar_lea.vmem %s3, %s481
      $region40: #{tpu_custom_call.1} parent=35 // pred_fallthru
        _
    $region36: #{tpu_custom_call.1} parent=5 // pred_fallthru
      _
  $region6: #{tpu_custom_call.1} parent=0 // loop_footer
    %s21 = sadd.s32 1, %s17
  $region7: #{tpu_custom_call.1} parent=0 // loop_footer_branch
    %16 = sbr.rel target = $region3
  $region8: #{tpu_custom_call.1} parent=0 // loop_exit
    _

</llo_original>
